<compile_context>
chip_gen: v7x
topology: tpu7x:2x2x1
jax: 0.10.0
libtpu: 0.0.40
codegen_flags: <defaults>
</compile_context>

<pallas_src>
import functools

import jax
import jax.numpy as jnp
from jax.experimental import pallas as pl
from jax.experimental.pallas import tpu as pltpu


_LANE = 128           # pad output feature dim to this for lane-dense stores
_MAX_TILE_B = 512     # batch-tile cap; fits scoped VMEM on v5e/v6e/v7x for these sizes
_NEG_INF = -1e30      # bias pad value: padded logit columns vanish in log_softmax


def _round_up(n, m):
    return (n + m - 1) // m * m


def _mlp_kernel(n_hidden, *refs):
    """Fused MLP forward on one batch tile.

    refs layout:
      refs[0]                      : x tile   (TILE_B, input_size)     bf16
      refs[1 + 2*i], refs[2 + 2*i] : W_i, b_i (in_i, out_i) bf16, (1, out_i) f32
      refs[1 + 2*n_hidden]         : W_out    (hidden_last, OUT_PAD)   bf16
      refs[2 + 2*n_hidden]         : b_out    (1, OUT_PAD)             f32
      refs[-1]                     : out tile (TILE_B, OUT_PAD)        f32
    """
    x_ref = refs[0]
    out_ref = refs[-1]

    h = x_ref[...]  # bf16 activations

    # Hidden layers: Linear -> ReLU (dropout is identity in eval mode).
    # TODO(synk): training-mode dropout (p=0.5) not implemented; eval semantics only.
    for i in range(n_hidden):
        w = refs[1 + 2 * i][...]
        b = refs[2 + 2 * i][...]
        z = jnp.dot(h, w, preferred_element_type=jnp.float32) + b   # f32 accumulate
        h = jnp.maximum(z, 0.0).astype(jnp.bfloat16)

    w_out = refs[1 + 2 * n_hidden][...]
    b_out = refs[2 + 2 * n_hidden][...]
    logits = jnp.dot(h, w_out, preferred_element_type=jnp.float32) + b_out

    # log_softmax along dim=1 (numerically stable). Padded columns carry a -1e30
    # bias so exp() contributes 0 and the max is taken over the real classes.
    m = jnp.max(logits, axis=1, keepdims=True)
    shifted = logits - m
    lse = jnp.log(jnp.sum(jnp.exp(shifted), axis=1, keepdims=True))
    out_ref[...] = shifted - lse


def prepare_params(params):
    """One-time conversion of PyTorch-layout params to the TPU kernel layout.

    Hidden weights -> (in, out) bf16, biases -> (1, out) f32.
    Output layer padded to a lane-dense width (multiple of 128): extra weight
    columns are zero, extra bias columns are -1e30.
    """
    hidden = []
    for (w, b) in params["hidden"]:
        hidden.append((
            jnp.asarray(w, jnp.float32).T.astype(jnp.bfloat16),     # (in, out)
            jnp.asarray(b, jnp.float32).reshape(1, -1),             # (1, out) f32
        ))

    w_out, b_out = params["output"]
    output_size = int(w_out.shape[0])
    out_pad = _round_up(output_size, _LANE)

    w_t = jnp.asarray(w_out, jnp.float32).T                         # (in, out)
    w_t = jnp.pad(w_t, ((0, 0), (0, out_pad - output_size)))
    b_p = jnp.pad(jnp.asarray(b_out, jnp.float32).reshape(1, -1),
                  ((0, 0), (0, out_pad - output_size)),
                  constant_values=_NEG_INF)

    return {
        "hidden": hidden,
        "output": (w_t.astype(jnp.bfloat16), b_p),
        "output_size": output_size,
        "out_pad": out_pad,
    }


def classifier_forward(x, prepped):
    """Runs the fused, batch-tiled Pallas MLP kernel.

    x       : any shape (B, ...) -- flattened to (B, input_size).
    prepped : output of prepare_params().
    """
    B = x.shape[0]
    # PyTorch does .float(); we then cast to bf16 for the MXU (f32 accumulation).
    x2d = jnp.reshape(x, (B, -1)).astype(jnp.float32).astype(jnp.bfloat16)
    input_size = x2d.shape[1]

    n_hidden = len(prepped["hidden"])
    output_size = prepped["output_size"]
    out_pad = prepped["out_pad"]

    # Batch tile: 16-row aligned (bf16 sublane packing), capped for VMEM budget.
    tile_b = min(_MAX_TILE_B, _round_up(B, 16))
    b_pad = _round_up(B, tile_b)
    if b_pad != B:
        x2d = jnp.pad(x2d, ((0, b_pad - B), (0, 0)))

    const_map = lambda i: (0, 0)   # weights/biases resident across the batch grid

    kernel_args = [x2d]
    in_specs = [pl.BlockSpec((tile_b, input_size), lambda i: (i, 0))]
    for (w, b) in prepped["hidden"]:
        kernel_args += [w, b]
        in_specs += [pl.BlockSpec(w.shape, const_map),
                     pl.BlockSpec(b.shape, const_map)]
    w_out, b_out = prepped["output"]
    kernel_args += [w_out, b_out]
    in_specs += [pl.BlockSpec(w_out.shape, const_map),
                 pl.BlockSpec(b_out.shape, const_map)]

    kernel = functools.partial(_mlp_kernel, n_hidden)

    out = pl.pallas_call(
        kernel,
        out_shape=jax.ShapeDtypeStruct((b_pad, out_pad), jnp.float32),
        grid=(b_pad // tile_b,),
        in_specs=in_specs,
        out_specs=pl.BlockSpec((tile_b, out_pad), lambda i: (i, 0)),
        compiler_params=pltpu.CompilerParams(
            dimension_semantics=("parallel",),     # shard batch tiles across TCs (v7x)
            vmem_limit_bytes=32 * 1024 * 1024,
        ),
    )(*kernel_args)

    return out[:B, :output_size]


def init_params(key, input_size, output_size, hidden_layers):
    """Deterministic parameter init mimicking nn.Linear shapes (PyTorch layout)."""
    params = {"hidden": [], "output": None}
    sizes = [input_size] + list(hidden_layers)
    for i in range(len(hidden_layers)):
        key, kw, kb = jax.random.split(key, 3)
        fan_in, fan_out = sizes[i], sizes[i + 1]
        bound = 1.0 / jnp.sqrt(fan_in)
        w = jax.random.uniform(kw, (fan_out, fan_in), jnp.float32, -bound, bound)
        b = jax.random.uniform(kb, (fan_out,), jnp.float32, -bound, bound)
        params["hidden"].append((w, b))
    key, kw, kb = jax.random.split(key, 3)
    fan_in = hidden_layers[-1]
    bound = 1.0 / jnp.sqrt(fan_in)
    w = jax.random.uniform(kw, (output_size, fan_in), jnp.float32, -bound, bound)
    b = jax.random.uniform(kb, (output_size,), jnp.float32, -bound, bound)
    params["output"] = (w, b)
    return params


def _reference_forward(x, params):
    """Pure-JAX f32 reference matching the PyTorch module (eval-mode dropout)."""
    h = jnp.reshape(x, (x.shape[0], -1)).astype(jnp.float32)
    for (w, b) in params["hidden"]:
        h = jnp.maximum(h @ w.T + b, 0.0)
    w, b = params["output"]
    logits = h @ w.T + b
    return jax.nn.log_softmax(logits, axis=1)


if __name__ == "__main__":
    key = jax.random.PRNGKey(0)

    # Small shapes consistent with the module: batch=2, flattened input 4*16*16=1024,
    # two hidden layers, 8 output classes.
    B, C, H, W = 2, 4, 16, 16
    input_size = C * H * W
    hidden_layers = [64, 32]
    output_size = 8

    key, kx = jax.random.split(key)
    x = jax.random.normal(kx, (B, C, H, W), jnp.float32)

    params = init_params(key, input_size, output_size, hidden_layers)
    prepped = prepare_params(params)          # one-time TPU layout / bf16 conversion

    out = classifier_forward(x, prepped)
    out = jax.block_until_ready(out)

    ref = _reference_forward(x, params)
    assert out.shape == (B, output_size)
    assert bool(jnp.all(jnp.isfinite(out)))
    # bf16 matmul operands (f32 accumulation) -> small drift vs f32 reference.
    assert jnp.allclose(out, ref, atol=3e-2, rtol=3e-2), "mismatch vs reference"

    print("KERNEL_OK")
</pallas_src>

<mosaic_0001>
module attributes {stable_mosaic.version = 11 : i64} {
  func.func @_mlp_kernel(%arg0: i32, %arg1: memref<16x1024xbf16, #tpu.memory_space<vmem>>, %arg2: memref<1024x64xbf16, #tpu.memory_space<vmem>>, %arg3: memref<1x64xf32, #tpu.memory_space<vmem>>, %arg4: memref<64x32xbf16, #tpu.memory_space<vmem>>, %arg5: memref<1x32xf32, #tpu.memory_space<vmem>>, %arg6: memref<32x128xbf16, #tpu.memory_space<vmem>>, %arg7: memref<1x128xf32, #tpu.memory_space<vmem>>, %arg8: memref<16x128xf32, #tpu.memory_space<vmem>>) attributes {dimension_semantics = [#tpu.dimension_semantics<parallel>], iteration_bounds = array<i64: 1>, scalar_prefetch = 0 : i64, scratch_operands = 0 : i64, tpu.core_type = #tpu.core_type<tc>, window_params = [{transform_indices = @transform_0, window_bounds = array<i64: 16, 1024>}, {pipeline_mode = #tpu.pipeline_mode<synchronous>, transform_indices = @transform_1, window_bounds = array<i64: 1024, 64>}, {pipeline_mode = #tpu.pipeline_mode<synchronous>, transform_indices = @transform_2, window_bounds = array<i64: 1, 64>}, {pipeline_mode = #tpu.pipeline_mode<synchronous>, transform_indices = @transform_3, window_bounds = array<i64: 64, 32>}, {pipeline_mode = #tpu.pipeline_mode<synchronous>, transform_indices = @transform_4, window_bounds = array<i64: 1, 32>}, {pipeline_mode = #tpu.pipeline_mode<synchronous>, transform_indices = @transform_5, window_bounds = array<i64: 32, 128>}, {pipeline_mode = #tpu.pipeline_mode<synchronous>, transform_indices = @transform_6, window_bounds = array<i64: 1, 128>}, {transform_indices = @transform_7, window_bounds = array<i64: 16, 128>}]} {
    %c0 = arith.constant 0 : index
    %c0_0 = arith.constant 0 : index
    %0 = vector.load %arg1[%c0, %c0_0] : memref<16x1024xbf16, #tpu.memory_space<vmem>>, vector<16x1024xbf16>
    %c0_1 = arith.constant 0 : index
    %c0_2 = arith.constant 0 : index
    %1 = vector.load %arg2[%c0_1, %c0_2] : memref<1024x64xbf16, #tpu.memory_space<vmem>>, vector<1024x64xbf16>
    %c0_3 = arith.constant 0 : index
    %c0_4 = arith.constant 0 : index
    %2 = vector.load %arg3[%c0_3, %c0_4] : memref<1x64xf32, #tpu.memory_space<vmem>>, vector<1x64xf32>
    %cst = arith.constant dense<0.000000e+00> : vector<16x64xf32>
    %3 = tpu.matmul %0, %1, %cst {dimension_numbers = #tpu.dot_dimension_numbers<[1], [0], [0], [1], [0, 0, 1, 1], [], []>} : vector<16x1024xbf16>, vector<1024x64xbf16>, vector<16x64xf32> -> vector<16x64xf32>
    %4 = vector.broadcast %2 : vector<1x64xf32> to vector<16x64xf32>
    %5 = arith.addf %3, %4 : vector<16x64xf32>
    %cst_5 = arith.constant 0.000000e+00 : f32
    %6 = vector.broadcast %cst_5 : f32 to vector<16x64xf32>
    %7 = arith.maximumf %5, %6 : vector<16x64xf32>
    %8 = arith.truncf %7 : vector<16x64xf32> to vector<16x64xbf16>
    %c0_6 = arith.constant 0 : index
    %c0_7 = arith.constant 0 : index
    %9 = vector.load %arg4[%c0_6, %c0_7] : memref<64x32xbf16, #tpu.memory_space<vmem>>, vector<64x32xbf16>
    %c0_8 = arith.constant 0 : index
    %c0_9 = arith.constant 0 : index
    %10 = vector.load %arg5[%c0_8, %c0_9] : memref<1x32xf32, #tpu.memory_space<vmem>>, vector<1x32xf32>
    %cst_10 = arith.constant dense<0.000000e+00> : vector<16x32xf32>
    %11 = tpu.matmul %8, %9, %cst_10 {dimension_numbers = #tpu.dot_dimension_numbers<[1], [0], [0], [1], [0, 0, 1, 1], [], []>} : vector<16x64xbf16>, vector<64x32xbf16>, vector<16x32xf32> -> vector<16x32xf32>
    %12 = vector.broadcast %10 : vector<1x32xf32> to vector<16x32xf32>
    %13 = arith.addf %11, %12 : vector<16x32xf32>
    %cst_11 = arith.constant 0.000000e+00 : f32
    %14 = vector.broadcast %cst_11 : f32 to vector<16x32xf32>
    %15 = arith.maximumf %13, %14 : vector<16x32xf32>
    %16 = arith.truncf %15 : vector<16x32xf32> to vector<16x32xbf16>
    %c0_12 = arith.constant 0 : index
    %c0_13 = arith.constant 0 : index
    %17 = vector.load %arg6[%c0_12, %c0_13] : memref<32x128xbf16, #tpu.memory_space<vmem>>, vector<32x128xbf16>
    %c0_14 = arith.constant 0 : index
    %c0_15 = arith.constant 0 : index
    %18 = vector.load %arg7[%c0_14, %c0_15] : memref<1x128xf32, #tpu.memory_space<vmem>>, vector<1x128xf32>
    %cst_16 = arith.constant dense<0.000000e+00> : vector<16x128xf32>
    %19 = tpu.matmul %16, %17, %cst_16 {dimension_numbers = #tpu.dot_dimension_numbers<[1], [0], [0], [1], [0, 0, 1, 1], [], []>} : vector<16x32xbf16>, vector<32x128xbf16>, vector<16x128xf32> -> vector<16x128xf32>
    %20 = vector.broadcast %18 : vector<1x128xf32> to vector<16x128xf32>
    %21 = arith.addf %19, %20 : vector<16x128xf32>
    %cst_17 = arith.constant dense<0xFF800000> : vector<16xf32>
    %22 = vector.multi_reduction <maximumf>, %21, %cst_17 [1] : vector<16x128xf32> to vector<16xf32>
    %23 = vector.shape_cast %22 : vector<16xf32> to vector<16x1xf32>
    %24 = vector.broadcast %23 : vector<16x1xf32> to vector<16x128xf32>
    %25 = arith.subf %21, %24 : vector<16x128xf32>
    %26 = math.exp %25 : vector<16x128xf32>
    %cst_18 = arith.constant dense<0.000000e+00> : vector<16xf32>
    %27 = vector.multi_reduction <add>, %26, %cst_18 [1] : vector<16x128xf32> to vector<16xf32>
    %28 = vector.shape_cast %27 : vector<16xf32> to vector<16x1xf32>
    %29 = math.log %28 : vector<16x1xf32>
    %30 = vector.broadcast %29 : vector<16x1xf32> to vector<16x128xf32>
    %31 = arith.subf %25, %30 : vector<16x128xf32>
    %c0_19 = arith.constant 0 : index
    %c0_20 = arith.constant 0 : index
    %32 = vector.load %arg8[%c0_19, %c0_20] : memref<16x128xf32, #tpu.memory_space<vmem>>, vector<16x128xf32>
    tpu.vector_store %arg8[%c0_19, %c0_20], %31 {strides = array<i32>} : memref<16x128xf32, #tpu.memory_space<vmem>>, vector<16x128xf32>,
    return
  }
  func.func @transform_0(%arg0: i32) -> (i32, i32) {
    %c0_i32 = arith.constant 0 : i32
    %c0_i32_0 = arith.constant 0 : i32
    return %arg0, %c0_i32 : i32, i32
  }
  func.func @transform_1(%arg0: i32) -> (i32, i32) {
    %c0_i32 = arith.constant 0 : i32
    %c0_i32_0 = arith.constant 0 : i32
    %c0_i32_1 = arith.constant 0 : i32
    return %c0_i32, %c0_i32_0 : i32, i32
  }
  func.func @transform_2(%arg0: i32) -> (i32, i32) {
    %c0_i32 = arith.constant 0 : i32
    %c0_i32_0 = arith.constant 0 : i32
    %c0_i32_1 = arith.constant 0 : i32
    return %c0_i32, %c0_i32_0 : i32, i32
  }
  func.func @transform_3(%arg0: i32) -> (i32, i32) {
    %c0_i32 = arith.constant 0 : i32
    %c0_i32_0 = arith.constant 0 : i32
    %c0_i32_1 = arith.constant 0 : i32
    return %c0_i32, %c0_i32_0 : i32, i32
  }
  func.func @transform_4(%arg0: i32) -> (i32, i32) {
    %c0_i32 = arith.constant 0 : i32
    %c0_i32_0 = arith.constant 0 : i32
    %c0_i32_1 = arith.constant 0 : i32
    return %c0_i32, %c0_i32_0 : i32, i32
  }
  func.func @transform_5(%arg0: i32) -> (i32, i32) {
    %c0_i32 = arith.constant 0 : i32
    %c0_i32_0 = arith.constant 0 : i32
    %c0_i32_1 = arith.constant 0 : i32
    return %c0_i32, %c0_i32_0 : i32, i32
  }
  func.func @transform_6(%arg0: i32) -> (i32, i32) {
    %c0_i32 = arith.constant 0 : i32
    %c0_i32_0 = arith.constant 0 : i32
    %c0_i32_1 = arith.constant 0 : i32
    return %c0_i32, %c0_i32_0 : i32, i32
  }
  func.func @transform_7(%arg0: i32) -> (i32, i32) {
    %c0_i32 = arith.constant 0 : i32
    %c0_i32_0 = arith.constant 0 : i32
    return %arg0, %c0_i32 : i32, i32
  }
}

</mosaic_0001>

<llo_original>
// kernel: tpu_custom_call.1
$region0: #{tpu_custom_call.1}
  #allocation0 [shape = 'u32[]', space=smem, size = 0x4, offset = 0x4, fixed_abs, tag = 'smem constant byte address 0x4 - core index']
  #allocation1 [shape = 'u32[144,128]{1,0:T(1,128)}', space=vmem, size = 0x12000, scoped, tag = 'internal scratch']
  %s0 = inlined_call_operand.vmem [shape: bf16[16,1024], index: 0, kind: input, shape index: {}]
  %s1 = inlined_call_operand.vmem [shape: bf16[1024,64], index: 1, kind: input, shape index: {}]
  %s2 = inlined_call_operand.vmem [shape: f32[1,64], index: 2, kind: input, shape index: {}]
  %s3 = inlined_call_operand.vmem [shape: bf16[64,32], index: 3, kind: input, shape index: {}]
  %s4 = inlined_call_operand.vmem [shape: f32[1,32], index: 4, kind: input, shape index: {}]
  %s5 = inlined_call_operand.vmem [shape: bf16[32,128], index: 5, kind: input, shape index: {}]
  %s6 = inlined_call_operand.vmem [shape: f32[1,128], index: 6, kind: input, shape index: {}]
  %s7 = inlined_call_operand.hbm [shape: f32[16,128], index: 7, kind: output, shape index: {}]
  %s8 = sld [smem:[#allocation0]]
  $region38: #{tpu_custom_call.1} parent=0
    _
  %s10 = ssub.s32 1, %s8
  %s11 = scalar_select 0, %s10, %s8
  $region1: #{tpu_custom_call.1} parent=0
    #allocation2 [shape = 'u8[8192]{0}', space=vmem, size = 0x2000, scoped, tag = 'output window, operand 0, single buffered']
    #allocation3 [shape = 's32[1]{0}', space=sflag, size = 0x4, scoped, tag = 'scoped memory for tpu_custom_call.1']
    %12 = vsyncpa [#allocation3], 0
    // Predicated region
    $region2: #{tpu_custom_call.1} parent=1 // pred_check
      _
    $region3: #{tpu_custom_call.1} parent=1 // pred_check_branch
      %14 = sbr.rel (0) target = $region5
    $region4: #{tpu_custom_call.1} parent=1 // pred_region
      _
    $region5: #{tpu_custom_call.1} parent=1 // pred_fallthru
      _
    // Predicated region
    $region6: #{tpu_custom_call.1} parent=1 // pred_check
      _
    $region7: #{tpu_custom_call.1} parent=1 // pred_check_branch
      %16 = sbr.rel (0) target = $region9
    $region8: #{tpu_custom_call.1} parent=1 // pred_region
      _
    $region9: #{tpu_custom_call.1} parent=1 // pred_fallthru
      _
    // Predicated region
    $region10: #{tpu_custom_call.1} parent=1 // pred_check
      _
    $region11: #{tpu_custom_call.1} parent=1 // pred_check_branch
      %18 = sbr.rel (0) target = $region13
    $region12: #{tpu_custom_call.1} parent=1 // pred_region
      _
    $region13: #{tpu_custom_call.1} parent=1 // pred_fallthru
      _
    // Predicated region
    $region14: #{tpu_custom_call.1} parent=1 // pred_check
      _
    $region15: #{tpu_custom_call.1} parent=1 // pred_check_branch
      %20 = sbr.rel (0) target = $region17
    $region16: #{tpu_custom_call.1} parent=1 // pred_region
      _
    $region17: #{tpu_custom_call.1} parent=1 // pred_fallthru
      _
    // Predicated region
    $region18: #{tpu_custom_call.1} parent=1 // pred_check
      _
    $region19: #{tpu_custom_call.1} parent=1 // pred_check_branch
      %22 = sbr.rel (0) target = $region21
    $region20: #{tpu_custom_call.1} parent=1 // pred_region
      _
    $region21: #{tpu_custom_call.1} parent=1 // pred_fallthru
      _
    // Predicated region
    $region22: #{tpu_custom_call.1} parent=1 // pred_check
      _
    $region23: #{tpu_custom_call.1} parent=1 // pred_check_branch
      %24 = sbr.rel (0) target = $region25
    $region24: #{tpu_custom_call.1} parent=1 // pred_region
      _
    $region25: #{tpu_custom_call.1} parent=1 // pred_fallthru
      _
    // Predicated region
    $region26: #{tpu_custom_call.1} parent=1 // pred_check
      _
    $region27: #{tpu_custom_call.1} parent=1 // pred_check_branch
      %26 = sbr.rel (0) target = $region29
    $region28: #{tpu_custom_call.1} parent=1 // pred_region
      _
    $region29: #{tpu_custom_call.1} parent=1 // pred_fallthru
      _
    %v28 = vld [vmem:[%s0] sm:$0xff]
    %v29 = vld [vmem:[%s0 + $0x8] sm:$0xff]
    %v30 = vld [vmem:[%s0 + $0x10] sm:$0xff]
    %v31 = vld [vmem:[%s0 + $0x18] sm:$0xff]
    %v32 = vld [vmem:[%s0 + $0x20] sm:$0xff]
    %v33 = vld [vmem:[%s0 + $0x28] sm:$0xff]
    %v34 = vld [vmem:[%s0 + $0x30] sm:$0xff]
    %v35 = vld [vmem:[%s0 + $0x38] sm:$0xff]
    %v36 = vld [vmem:[%s1] sm:$0xf]
    %v37 = vld [vmem:[%s1 + $0x4] sm:$0xf]
    %v38 = vld [vmem:[%s1 + $0x8] sm:$0xf]
    %v39 = vld [vmem:[%s1 + $0xc] sm:$0xf]
    %v40 = vld [vmem:[%s1 + $0x10] sm:$0xf]
    %v41 = vld [vmem:[%s1 + $0x14] sm:$0xf]
    %v42 = vld [vmem:[%s1 + $0x18] sm:$0xf]
    %v43 = vld [vmem:[%s1 + $0x1c] sm:$0xf]
    %v44 = vld [vmem:[%s1 + $0x20] sm:$0xf]
    %v45 = vld [vmem:[%s1 + $0x24] sm:$0xf]
    %v46 = vld [vmem:[%s1 + $0x28] sm:$0xf]
    %v47 = vld [vmem:[%s1 + $0x2c] sm:$0xf]
    %v48 = vld [vmem:[%s1 + $0x30] sm:$0xf]
    %v49 = vld [vmem:[%s1 + $0x34] sm:$0xf]
    %v50 = vld [vmem:[%s1 + $0x38] sm:$0xf]
    %v51 = vld [vmem:[%s1 + $0x3c] sm:$0xf]
    %v52 = vld [vmem:[%s1 + $0x40] sm:$0xf]
    %v53 = vld [vmem:[%s1 + $0x44] sm:$0xf]
    %v54 = vld [vmem:[%s1 + $0x48] sm:$0xf]
    %v55 = vld [vmem:[%s1 + $0x4c] sm:$0xf]
    %v56 = vld [vmem:[%s1 + $0x50] sm:$0xf]
    %v57 = vld [vmem:[%s1 + $0x54] sm:$0xf]
    %v58 = vld [vmem:[%s1 + $0x58] sm:$0xf]
    %v59 = vld [vmem:[%s1 + $0x5c] sm:$0xf]
    %v60 = vld [vmem:[%s1 + $0x60] sm:$0xf]
    %v61 = vld [vmem:[%s1 + $0x64] sm:$0xf]
    %v62 = vld [vmem:[%s1 + $0x68] sm:$0xf]
    %v63 = vld [vmem:[%s1 + $0x6c] sm:$0xf]
    %v64 = vld [vmem:[%s1 + $0x70] sm:$0xf]
    %v65 = vld [vmem:[%s1 + $0x74] sm:$0xf]
    %v66 = vld [vmem:[%s1 + $0x78] sm:$0xf]
    %v67 = vld [vmem:[%s1 + $0x7c] sm:$0xf]
    %v68 = vld [vmem:[%s1 + $0x80] sm:$0xf]
    %v69 = vld [vmem:[%s1 + $0x84] sm:$0xf]
    %v70 = vld [vmem:[%s1 + $0x88] sm:$0xf]
    %v71 = vld [vmem:[%s1 + $0x8c] sm:$0xf]
    %v72 = vld [vmem:[%s1 + $0x90] sm:$0xf]
    %v73 = vld [vmem:[%s1 + $0x94] sm:$0xf]
    %v74 = vld [vmem:[%s1 + $0x98] sm:$0xf]
    %v75 = vld [vmem:[%s1 + $0x9c] sm:$0xf]
    %v76 = vld [vmem:[%s1 + $0xa0] sm:$0xf]
    %v77 = vld [vmem:[%s1 + $0xa4] sm:$0xf]
    %v78 = vld [vmem:[%s1 + $0xa8] sm:$0xf]
    %v79 = vld [vmem:[%s1 + $0xac] sm:$0xf]
    %v80 = vld [vmem:[%s1 + $0xb0] sm:$0xf]
    %v81 = vld [vmem:[%s1 + $0xb4] sm:$0xf]
    %v82 = vld [vmem:[%s1 + $0xb8] sm:$0xf]
    %v83 = vld [vmem:[%s1 + $0xbc] sm:$0xf]
    %v84 = vld [vmem:[%s1 + $0xc0] sm:$0xf]
    %v85 = vld [vmem:[%s1 + $0xc4] sm:$0xf]
    %v86 = vld [vmem:[%s1 + $0xc8] sm:$0xf]
    %v87 = vld [vmem:[%s1 + $0xcc] sm:$0xf]
    %v88 = vld [vmem:[%s1 + $0xd0] sm:$0xf]
    %v89 = vld [vmem:[%s1 + $0xd4] sm:$0xf]
    %v90 = vld [vmem:[%s1 + $0xd8] sm:$0xf]
    %v91 = vld [vmem:[%s1 + $0xdc] sm:$0xf]
    %v92 = vld [vmem:[%s1 + $0xe0] sm:$0xf]
    %v93 = vld [vmem:[%s1 + $0xe4] sm:$0xf]
    %v94 = vld [vmem:[%s1 + $0xe8] sm:$0xf]
    %v95 = vld [vmem:[%s1 + $0xec] sm:$0xf]
    %v96 = vld [vmem:[%s1 + $0xf0] sm:$0xf]
    %v97 = vld [vmem:[%s1 + $0xf4] sm:$0xf]
    %v98 = vld [vmem:[%s1 + $0xf8] sm:$0xf]
    %v99 = vld [vmem:[%s1 + $0xfc] sm:$0xf]
    %v100 = vld [vmem:[%s1 + $0x100] sm:$0xf]
    %v101 = vld [vmem:[%s1 + $0x104] sm:$0xf]
    %v102 = vld [vmem:[%s1 + $0x108] sm:$0xf]
    %v103 = vld [vmem:[%s1 + $0x10c] sm:$0xf]
    %v104 = vld [vmem:[%s1 + $0x110] sm:$0xf]
    %v105 = vld [vmem:[%s1 + $0x114] sm:$0xf]
    %v106 = vld [vmem:[%s1 + $0x118] sm:$0xf]
    %v107 = vld [vmem:[%s1 + $0x11c] sm:$0xf]
    %v108 = vld [vmem:[%s1 + $0x120] sm:$0xf]
    %v109 = vld [vmem:[%s1 + $0x124] sm:$0xf]
    %v110 = vld [vmem:[%s1 + $0x128] sm:$0xf]
    %v111 = vld [vmem:[%s1 + $0x12c] sm:$0xf]
    %v112 = vld [vmem:[%s1 + $0x130] sm:$0xf]
    %v113 = vld [vmem:[%s1 + $0x134] sm:$0xf]
    %v114 = vld [vmem:[%s1 + $0x138] sm:$0xf]
    %v115 = vld [vmem:[%s1 + $0x13c] sm:$0xf]
    %v116 = vld [vmem:[%s1 + $0x140] sm:$0xf]
    %v117 = vld [vmem:[%s1 + $0x144] sm:$0xf]
    %v118 = vld [vmem:[%s1 + $0x148] sm:$0xf]
    %v119 = vld [vmem:[%s1 + $0x14c] sm:$0xf]
    %v120 = vld [vmem:[%s1 + $0x150] sm:$0xf]
    %v121 = vld [vmem:[%s1 + $0x154] sm:$0xf]
    %v122 = vld [vmem:[%s1 + $0x158] sm:$0xf]
    %v123 = vld [vmem:[%s1 + $0x15c] sm:$0xf]
    %v124 = vld [vmem:[%s1 + $0x160] sm:$0xf]
    %v125 = vld [vmem:[%s1 + $0x164] sm:$0xf]
    %v126 = vld [vmem:[%s1 + $0x168] sm:$0xf]
    %v127 = vld [vmem:[%s1 + $0x16c] sm:$0xf]
    %v128 = vld [vmem:[%s1 + $0x170] sm:$0xf]
    %v129 = vld [vmem:[%s1 + $0x174] sm:$0xf]
    %v130 = vld [vmem:[%s1 + $0x178] sm:$0xf]
    %v131 = vld [vmem:[%s1 + $0x17c] sm:$0xf]
    %v132 = vld [vmem:[%s1 + $0x180] sm:$0xf]
    %v133 = vld [vmem:[%s1 + $0x184] sm:$0xf]
    %v134 = vld [vmem:[%s1 + $0x188] sm:$0xf]
    %v135 = vld [vmem:[%s1 + $0x18c] sm:$0xf]
    %v136 = vld [vmem:[%s1 + $0x190] sm:$0xf]
    %v137 = vld [vmem:[%s1 + $0x194] sm:$0xf]
    %v138 = vld [vmem:[%s1 + $0x198] sm:$0xf]
    %v139 = vld [vmem:[%s1 + $0x19c] sm:$0xf]
    %v140 = vld [vmem:[%s1 + $0x1a0] sm:$0xf]
    %v141 = vld [vmem:[%s1 + $0x1a4] sm:$0xf]
    %v142 = vld [vmem:[%s1 + $0x1a8] sm:$0xf]
    %v143 = vld [vmem:[%s1 + $0x1ac] sm:$0xf]
    %v144 = vld [vmem:[%s1 + $0x1b0] sm:$0xf]
    %v145 = vld [vmem:[%s1 + $0x1b4] sm:$0xf]
    %v146 = vld [vmem:[%s1 + $0x1b8] sm:$0xf]
    %v147 = vld [vmem:[%s1 + $0x1bc] sm:$0xf]
    %v148 = vld [vmem:[%s1 + $0x1c0] sm:$0xf]
    %v149 = vld [vmem:[%s1 + $0x1c4] sm:$0xf]
    %v150 = vld [vmem:[%s1 + $0x1c8] sm:$0xf]
    %v151 = vld [vmem:[%s1 + $0x1cc] sm:$0xf]
    %v152 = vld [vmem:[%s1 + $0x1d0] sm:$0xf]
    %v153 = vld [vmem:[%s1 + $0x1d4] sm:$0xf]
    %v154 = vld [vmem:[%s1 + $0x1d8] sm:$0xf]
    %v155 = vld [vmem:[%s1 + $0x1dc] sm:$0xf]
    %v156 = vld [vmem:[%s1 + $0x1e0] sm:$0xf]
    %v157 = vld [vmem:[%s1 + $0x1e4] sm:$0xf]
    %v158 = vld [vmem:[%s1 + $0x1e8] sm:$0xf]
    %v159 = vld [vmem:[%s1 + $0x1ec] sm:$0xf]
    %v160 = vld [vmem:[%s1 + $0x1f0] sm:$0xf]
    %v161 = vld [vmem:[%s1 + $0x1f4] sm:$0xf]
    %v162 = vld [vmem:[%s1 + $0x1f8] sm:$0xf]
    %v163 = vld [vmem:[%s1 + $0x1fc] sm:$0xf]
    %v164 = vld [vmem:[%s2] sm:$0x1]
    %v166 = vlaneseq
    %v167 = vshrl.u32 %v166, 7
    %v168 = vsub.s32 0, %v167
    %v169 = vrot.slane %v164, %v168
    %v179 = vunpack.c.l.b16 %v28
    %v180 = vunpack.c.h.b16 %v28
    %v181 = vunpack.c.l.b16 %v29
    %v182 = vunpack.c.h.b16 %v29
    %v183 = vunpack.c.l.b16 %v30
    %v184 = vunpack.c.h.b16 %v30
    %v185 = vunpack.c.l.b16 %v31
    %v186 = vunpack.c.h.b16 %v31
    %v187 = vunpack.c.l.b16 %v32
    %v188 = vunpack.c.h.b16 %v32
    %v189 = vunpack.c.l.b16 %v33
    %v190 = vunpack.c.h.b16 %v33
    %v191 = vunpack.c.l.b16 %v34
    %v192 = vunpack.c.h.b16 %v34
    %v193 = vunpack.c.l.b16 %v35
    %v194 = vunpack.c.h.b16 %v35
    %v195 = vpack.c.b16 %v187, %v179
    %v196 = vpack.c.b16 %v188, %v180
    %v197 = vpack.c.b16 %v189, %v181
    %v198 = vpack.c.b16 %v190, %v182
    %v199 = vpack.c.b16 %v191, %v183
    %v200 = vpack.c.b16 %v192, %v184
    %v201 = vpack.c.b16 %v193, %v185
    %v202 = vpack.c.b16 %v194, %v186
    %v339 = vunpack.c.l.b16 %v36
    %v340 = vunpack.c.l.b16 %v37
    %v341 = vunpack.c.l.b16 %v38
    %v342 = vunpack.c.l.b16 %v39
    %v343 = vunpack.c.l.b16 %v40
    %v344 = vunpack.c.l.b16 %v41
    %v345 = vunpack.c.l.b16 %v42
    %v346 = vunpack.c.l.b16 %v43
    %v347 = vunpack.c.l.b16 %v44
    %v348 = vunpack.c.l.b16 %v45
    %v349 = vunpack.c.l.b16 %v46
    %v350 = vunpack.c.l.b16 %v47
    %v351 = vunpack.c.l.b16 %v48
    %v352 = vunpack.c.l.b16 %v49
    %v353 = vunpack.c.l.b16 %v50
    %v354 = vunpack.c.l.b16 %v51
    %v355 = vunpack.c.l.b16 %v52
    %v356 = vunpack.c.l.b16 %v53
    %v357 = vunpack.c.l.b16 %v54
    %v358 = vunpack.c.l.b16 %v55
    %v359 = vunpack.c.l.b16 %v56
    %v360 = vunpack.c.l.b16 %v57
    %v361 = vunpack.c.l.b16 %v58
    %v362 = vunpack.c.l.b16 %v59
    %v363 = vunpack.c.l.b16 %v60
    %v364 = vunpack.c.l.b16 %v61
    %v365 = vunpack.c.l.b16 %v62
    %v366 = vunpack.c.l.b16 %v63
    %v367 = vunpack.c.l.b16 %v64
    %v368 = vunpack.c.l.b16 %v65
    %v369 = vunpack.c.l.b16 %v66
    %v370 = vunpack.c.l.b16 %v67
    %v371 = vunpack.c.l.b16 %v68
    %v372 = vunpack.c.l.b16 %v69
    %v373 = vunpack.c.l.b16 %v70
    %v374 = vunpack.c.l.b16 %v71
    %v375 = vunpack.c.l.b16 %v72
    %v376 = vunpack.c.l.b16 %v73
    %v377 = vunpack.c.l.b16 %v74
    %v378 = vunpack.c.l.b16 %v75
    %v379 = vunpack.c.l.b16 %v76
    %v380 = vunpack.c.l.b16 %v77
    %v381 = vunpack.c.l.b16 %v78
    %v382 = vunpack.c.l.b16 %v79
    %v383 = vunpack.c.l.b16 %v80
    %v384 = vunpack.c.l.b16 %v81
    %v385 = vunpack.c.l.b16 %v82
    %v386 = vunpack.c.l.b16 %v83
    %v387 = vunpack.c.l.b16 %v84
    %v388 = vunpack.c.l.b16 %v85
    %v389 = vunpack.c.l.b16 %v86
    %v390 = vunpack.c.l.b16 %v87
    %v391 = vunpack.c.l.b16 %v88
    %v392 = vunpack.c.l.b16 %v89
    %v393 = vunpack.c.l.b16 %v90
    %v394 = vunpack.c.l.b16 %v91
    %v395 = vunpack.c.l.b16 %v92
    %v396 = vunpack.c.l.b16 %v93
    %v397 = vunpack.c.l.b16 %v94
    %v398 = vunpack.c.l.b16 %v95
    %v399 = vunpack.c.l.b16 %v96
    %v400 = vunpack.c.l.b16 %v97
    %v401 = vunpack.c.l.b16 %v98
    %v402 = vunpack.c.l.b16 %v99
    %v403 = vunpack.c.l.b16 %v100
    %v404 = vunpack.c.l.b16 %v101
    %v405 = vunpack.c.l.b16 %v102
    %v406 = vunpack.c.l.b16 %v103
    %v407 = vunpack.c.l.b16 %v104
    %v408 = vunpack.c.l.b16 %v105
    %v409 = vunpack.c.l.b16 %v106
    %v410 = vunpack.c.l.b16 %v107
    %v411 = vunpack.c.l.b16 %v108
    %v412 = vunpack.c.l.b16 %v109
    %v413 = vunpack.c.l.b16 %v110
    %v414 = vunpack.c.l.b16 %v111
    %v415 = vunpack.c.l.b16 %v112
    %v416 = vunpack.c.l.b16 %v113
    %v417 = vunpack.c.l.b16 %v114
    %v418 = vunpack.c.l.b16 %v115
    %v419 = vunpack.c.l.b16 %v116
    %v420 = vunpack.c.l.b16 %v117
    %v421 = vunpack.c.l.b16 %v118
    %v422 = vunpack.c.l.b16 %v119
    %v423 = vunpack.c.l.b16 %v120
    %v424 = vunpack.c.l.b16 %v121
    %v425 = vunpack.c.l.b16 %v122
    %v426 = vunpack.c.l.b16 %v123
    %v427 = vunpack.c.l.b16 %v124
    %v428 = vunpack.c.l.b16 %v125
    %v429 = vunpack.c.l.b16 %v126
    %v430 = vunpack.c.l.b16 %v127
    %v431 = vunpack.c.l.b16 %v128
    %v432 = vunpack.c.l.b16 %v129
    %v433 = vunpack.c.l.b16 %v130
    %v434 = vunpack.c.l.b16 %v131
    %v435 = vunpack.c.l.b16 %v132
    %v436 = vunpack.c.l.b16 %v133
    %v437 = vunpack.c.l.b16 %v134
    %v438 = vunpack.c.l.b16 %v135
    %v439 = vunpack.c.l.b16 %v136
    %v440 = vunpack.c.l.b16 %v137
    %v441 = vunpack.c.l.b16 %v138
    %v442 = vunpack.c.l.b16 %v139
    %v443 = vunpack.c.l.b16 %v140
    %v444 = vunpack.c.l.b16 %v141
    %v445 = vunpack.c.l.b16 %v142
    %v446 = vunpack.c.l.b16 %v143
    %v447 = vunpack.c.l.b16 %v144
    %v448 = vunpack.c.l.b16 %v145
    %v449 = vunpack.c.l.b16 %v146
    %v450 = vunpack.c.l.b16 %v147
    %v451 = vunpack.c.l.b16 %v148
    %v452 = vunpack.c.l.b16 %v149
    %v453 = vunpack.c.l.b16 %v150
    %v454 = vunpack.c.l.b16 %v151
    %v455 = vunpack.c.l.b16 %v152
    %v456 = vunpack.c.l.b16 %v153
    %v457 = vunpack.c.l.b16 %v154
    %v458 = vunpack.c.l.b16 %v155
    %v459 = vunpack.c.l.b16 %v156
    %v460 = vunpack.c.l.b16 %v157
    %v461 = vunpack.c.l.b16 %v158
    %v462 = vunpack.c.l.b16 %v159
    %v463 = vunpack.c.l.b16 %v160
    %v464 = vunpack.c.l.b16 %v161
    %v465 = vunpack.c.l.b16 %v162
    %v466 = vunpack.c.l.b16 %v163
    %v467 = vpack.c.b16 %v340, %v339
    %v468 = vpack.c.b16 %v342, %v341
    %v469 = vpack.c.b16 %v344, %v343
    %v470 = vpack.c.b16 %v346, %v345
    %v471 = vpack.c.b16 %v348, %v347
    %v472 = vpack.c.b16 %v350, %v349
    %v473 = vpack.c.b16 %v352, %v351
    %v474 = vpack.c.b16 %v354, %v353
    %v475 = vpack.c.b16 %v356, %v355
    %v476 = vpack.c.b16 %v358, %v357
    %v477 = vpack.c.b16 %v360, %v359
    %v478 = vpack.c.b16 %v362, %v361
    %v479 = vpack.c.b16 %v364, %v363
    %v480 = vpack.c.b16 %v366, %v365
    %v481 = vpack.c.b16 %v368, %v367
    %v482 = vpack.c.b16 %v370, %v369
    %v483 = vpack.c.b16 %v372, %v371
    %v484 = vpack.c.b16 %v374, %v373
    %v485 = vpack.c.b16 %v376, %v375
    %v486 = vpack.c.b16 %v378, %v377
    %v487 = vpack.c.b16 %v380, %v379
    %v488 = vpack.c.b16 %v382, %v381
    %v489 = vpack.c.b16 %v384, %v383
    %v490 = vpack.c.b16 %v386, %v385
    %v491 = vpack.c.b16 %v388, %v387
    %v492 = vpack.c.b16 %v390, %v389
    %v493 = vpack.c.b16 %v392, %v391
    %v494 = vpack.c.b16 %v394, %v393
    %v495 = vpack.c.b16 %v396, %v395
    %v496 = vpack.c.b16 %v398, %v397
    %v497 = vpack.c.b16 %v400, %v399
    %v498 = vpack.c.b16 %v402, %v401
    %v499 = vpack.c.b16 %v404, %v403
    %v500 = vpack.c.b16 %v406, %v405
    %v501 = vpack.c.b16 %v408, %v407
    %v502 = vpack.c.b16 %v410, %v409
    %v503 = vpack.c.b16 %v412, %v411
    %v504 = vpack.c.b16 %v414, %v413
    %v505 = vpack.c.b16 %v416, %v415
    %v506 = vpack.c.b16 %v418, %v417
    %v507 = vpack.c.b16 %v420, %v419
    %v508 = vpack.c.b16 %v422, %v421
    %v509 = vpack.c.b16 %v424, %v423
    %v510 = vpack.c.b16 %v426, %v425
    %v511 = vpack.c.b16 %v428, %v427
    %v512 = vpack.c.b16 %v430, %v429
    %v513 = vpack.c.b16 %v432, %v431
    %v514 = vpack.c.b16 %v434, %v433
    %v515 = vpack.c.b16 %v436, %v435
    %v516 = vpack.c.b16 %v438, %v437
    %v517 = vpack.c.b16 %v440, %v439
    %v518 = vpack.c.b16 %v442, %v441
    %v519 = vpack.c.b16 %v444, %v443
    %v520 = vpack.c.b16 %v446, %v445
    %v521 = vpack.c.b16 %v448, %v447
    %v522 = vpack.c.b16 %v450, %v449
    %v523 = vpack.c.b16 %v452, %v451
    %v524 = vpack.c.b16 %v454, %v453
    %v525 = vpack.c.b16 %v456, %v455
    %v526 = vpack.c.b16 %v458, %v457
    %v527 = vpack.c.b16 %v460, %v459
    %v528 = vpack.c.b16 %v462, %v461
    %v529 = vpack.c.b16 %v464, %v463
    %v530 = vpack.c.b16 %v466, %v465
    %595 = vmatprep.subr.bf16.mxu0 0
    %596 = vmatpush1.bf16.msra.mxu0 %v467
    %597 = vmatprep.subr.bf16.mxu0 0
    %598 = vmatpush1.bf16.msra.mxu0 %v468
    %599 = vmatprep.subr.bf16.mxu0 0
    %600 = vmatpush1.bf16.msra.mxu0 %v469
    %601 = vmatprep.subr.bf16.mxu0 0
    %602 = vmatpush1.bf16.msra.mxu0 %v470
    %603 = vmatprep.subr.bf16.mxu0 0
    %604 = vmatpush1.bf16.msra.mxu0 %v471
    %605 = vmatprep.subr.bf16.mxu0 0
    %606 = vmatpush1.bf16.msra.mxu0 %v472
    %607 = vmatprep.subr.bf16.mxu0 0
    %608 = vmatpush1.bf16.msra.mxu0 %v473
    %609 = vmatprep.subr.bf16.mxu0 0
    %610 = vmatpush1.bf16.msra.mxu0 %v474
    %611 = vmatprep.subr.bf16.mxu0 0
    %612 = vmatpush1.bf16.msra.mxu0 %v475
    %613 = vmatprep.subr.bf16.mxu0 0
    %614 = vmatpush1.bf16.msra.mxu0 %v476
    %615 = vmatprep.subr.bf16.mxu0 0
    %616 = vmatpush1.bf16.msra.mxu0 %v477
    %617 = vmatprep.subr.bf16.mxu0 0
    %618 = vmatpush1.bf16.msra.mxu0 %v478
    %619 = vmatprep.subr.bf16.mxu0 0
    %620 = vmatpush1.bf16.msra.mxu0 %v479
    %621 = vmatprep.subr.bf16.mxu0 0
    %622 = vmatpush1.bf16.msra.mxu0 %v480
    %623 = vmatprep.subr.bf16.mxu0 0
    %624 = vmatpush1.bf16.msra.mxu0 %v481
    %625 = vmatprep.subr.bf16.mxu0 0
    %626 = vmatpush1.bf16.msra.mxu0 %v482
    %627 = vmatprep.mubr.bf16.mxu0 %v196
    %628 = vmatmul.mubr.bf16.gmra.mrb[0].mxu0 %v195
    %v629 = vpop.f32.mrb[0].mxu0
    %v630 = vadd.f32 %v169, %v629
    %v631 = vpop.f32.mrb[0].mxu0
    %v632 = vpop.f32.mrb[0].mxu0
    %v633 = vadd.f32 %v169, %v632
    %v634 = vpop.f32.mrb[0].mxu0
    %635 = vdwg.mxu0
    %636 = vmatprep.subr.bf16.mxu0 0
    %637 = vmatpush1.bf16.msra.mxu0 %v483
    %638 = vmatprep.subr.bf16.mxu0 0
    %639 = vmatpush1.bf16.msra.mxu0 %v484
    %640 = vmatprep.subr.bf16.mxu0 0
    %641 = vmatpush1.bf16.msra.mxu0 %v485
    %642 = vmatprep.subr.bf16.mxu0 0
    %643 = vmatpush1.bf16.msra.mxu0 %v486
    %644 = vmatprep.subr.bf16.mxu0 0
    %645 = vmatpush1.bf16.msra.mxu0 %v487
    %646 = vmatprep.subr.bf16.mxu0 0
    %647 = vmatpush1.bf16.msra.mxu0 %v488
    %648 = vmatprep.subr.bf16.mxu0 0
    %649 = vmatpush1.bf16.msra.mxu0 %v489
    %650 = vmatprep.subr.bf16.mxu0 0
    %651 = vmatpush1.bf16.msra.mxu0 %v490
    %652 = vmatprep.subr.bf16.mxu0 0
    %653 = vmatpush1.bf16.msra.mxu0 %v491
    %654 = vmatprep.subr.bf16.mxu0 0
    %655 = vmatpush1.bf16.msra.mxu0 %v492
    %656 = vmatprep.subr.bf16.mxu0 0
    %657 = vmatpush1.bf16.msra.mxu0 %v493
    %658 = vmatprep.subr.bf16.mxu0 0
    %659 = vmatpush1.bf16.msra.mxu0 %v494
    %660 = vmatprep.subr.bf16.mxu0 0
    %661 = vmatpush1.bf16.msra.mxu0 %v495
    %662 = vmatprep.subr.bf16.mxu0 0
    %663 = vmatpush1.bf16.msra.mxu0 %v496
    %664 = vmatprep.subr.bf16.mxu0 0
    %665 = vmatpush1.bf16.msra.mxu0 %v497
    %666 = vmatprep.subr.bf16.mxu0 0
    %667 = vmatpush1.bf16.msra.mxu0 %v498
    %668 = vmatprep.mubr.bf16.mxu0 %v198
    %669 = vmatmul.mubr.bf16.gmra.mrb[0].mxu0 %v197
    %v670 = vpop.f32.mrb[0].mxu0
    %v671 = vadd.f32 %v630, %v670
    %v672 = vpop.f32.mrb[0].mxu0
    %v673 = vpop.f32.mrb[0].mxu0
    %v674 = vadd.f32 %v633, %v673
    %v675 = vpop.f32.mrb[0].mxu0
    %676 = vdwg.mxu0
    %677 = vmatprep.subr.bf16.mxu0 0
    %678 = vmatpush1.bf16.msra.mxu0 %v499
    %679 = vmatprep.subr.bf16.mxu0 0
    %680 = vmatpush1.bf16.msra.mxu0 %v500
    %681 = vmatprep.subr.bf16.mxu0 0
    %682 = vmatpush1.bf16.msra.mxu0 %v501
    %683 = vmatprep.subr.bf16.mxu0 0
    %684 = vmatpush1.bf16.msra.mxu0 %v502
    %685 = vmatprep.subr.bf16.mxu0 0
    %686 = vmatpush1.bf16.msra.mxu0 %v503
    %687 = vmatprep.subr.bf16.mxu0 0
    %688 = vmatpush1.bf16.msra.mxu0 %v504
    %689 = vmatprep.subr.bf16.mxu0 0
    %690 = vmatpush1.bf16.msra.mxu0 %v505
    %691 = vmatprep.subr.bf16.mxu0 0
    %692 = vmatpush1.bf16.msra.mxu0 %v506
    %693 = vmatprep.subr.bf16.mxu0 0
    %694 = vmatpush1.bf16.msra.mxu0 %v507
    %695 = vmatprep.subr.bf16.mxu0 0
    %696 = vmatpush1.bf16.msra.mxu0 %v508
    %697 = vmatprep.subr.bf16.mxu0 0
    %698 = vmatpush1.bf16.msra.mxu0 %v509
    %699 = vmatprep.subr.bf16.mxu0 0
    %700 = vmatpush1.bf16.msra.mxu0 %v510
    %701 = vmatprep.subr.bf16.mxu0 0
    %702 = vmatpush1.bf16.msra.mxu0 %v511
    %703 = vmatprep.subr.bf16.mxu0 0
    %704 = vmatpush1.bf16.msra.mxu0 %v512
    %705 = vmatprep.subr.bf16.mxu0 0
    %706 = vmatpush1.bf16.msra.mxu0 %v513
    %707 = vmatprep.subr.bf16.mxu0 0
    %708 = vmatpush1.bf16.msra.mxu0 %v514
    %709 = vmatprep.mubr.bf16.mxu0 %v200
    %710 = vmatmul.mubr.bf16.gmra.mrb[0].mxu0 %v199
    %v711 = vpop.f32.mrb[0].mxu0
    %v712 = vadd.f32 %v671, %v711
    %v713 = vpop.f32.mrb[0].mxu0
    %v714 = vpop.f32.mrb[0].mxu0
    %v715 = vadd.f32 %v674, %v714
    %v716 = vpop.f32.mrb[0].mxu0
    %717 = vdwg.mxu0
    %718 = vmatprep.subr.bf16.mxu0 0
    %719 = vmatpush1.bf16.msra.mxu0 %v515
    %720 = vmatprep.subr.bf16.mxu0 0
    %721 = vmatpush1.bf16.msra.mxu0 %v516
    %722 = vmatprep.subr.bf16.mxu0 0
    %723 = vmatpush1.bf16.msra.mxu0 %v517
    %724 = vmatprep.subr.bf16.mxu0 0
    %725 = vmatpush1.bf16.msra.mxu0 %v518
    %726 = vmatprep.subr.bf16.mxu0 0
    %727 = vmatpush1.bf16.msra.mxu0 %v519
    %728 = vmatprep.subr.bf16.mxu0 0
    %729 = vmatpush1.bf16.msra.mxu0 %v520
    %730 = vmatprep.subr.bf16.mxu0 0
    %731 = vmatpush1.bf16.msra.mxu0 %v521
    %732 = vmatprep.subr.bf16.mxu0 0
    %733 = vmatpush1.bf16.msra.mxu0 %v522
    %734 = vmatprep.subr.bf16.mxu0 0
    %735 = vmatpush1.bf16.msra.mxu0 %v523
    %736 = vmatprep.subr.bf16.mxu0 0
    %737 = vmatpush1.bf16.msra.mxu0 %v524
    %738 = vmatprep.subr.bf16.mxu0 0
    %739 = vmatpush1.bf16.msra.mxu0 %v525
    %740 = vmatprep.subr.bf16.mxu0 0
    %741 = vmatpush1.bf16.msra.mxu0 %v526
    %742 = vmatprep.subr.bf16.mxu0 0
    %743 = vmatpush1.bf16.msra.mxu0 %v527
    %744 = vmatprep.subr.bf16.mxu0 0
    %745 = vmatpush1.bf16.msra.mxu0 %v528
    %746 = vmatprep.subr.bf16.mxu0 0
    %747 = vmatpush1.bf16.msra.mxu0 %v529
    %748 = vmatprep.subr.bf16.mxu0 0
    %749 = vmatpush1.bf16.msra.mxu0 %v530
    %750 = vmatprep.mubr.bf16.mxu0 %v202
    %751 = vmatmul.mubr.bf16.gmra.mrb[0].mxu0 %v201
    %v752 = vpop.f32.mrb[0].mxu0
    %v753 = vadd.f32 %v712, %v752
    %v754 = vpop.f32.mrb[0].mxu0
    %v755 = vpop.f32.mrb[0].mxu0
    %v756 = vadd.f32 %v715, %v755
    %v757 = vpop.f32.mrb[0].mxu0
    %758 = vdwg.mxu0
    %v759 = vmax.f32 %v753, 0.0
    %v760 = vmax.f32 %v756, 0.0
    %v761 = vpack.c.bf16 %v760, %v759
    %v762 = vld [vmem:[%s3] sm:$0xf]
    %v763 = vld [vmem:[%s3 + $0x4] sm:$0xf]
    %v764 = vld [vmem:[%s3 + $0x8] sm:$0xf]
    %v765 = vld [vmem:[%s3 + $0xc] sm:$0xf]
    %v766 = vld [vmem:[%s3 + $0x10] sm:$0xf]
    %v767 = vld [vmem:[%s3 + $0x14] sm:$0xf]
    %v768 = vld [vmem:[%s3 + $0x18] sm:$0xf]
    %v769 = vld [vmem:[%s3 + $0x1c] sm:$0xf]
    %v770 = vld [vmem:[%s4] sm:$0x1]
    %v772 = vlaneseq
    %v773 = vshrl.u32 %v772, 7
    %v774 = vsub.s32 0, %v773
    %v775 = vrot.slane %v770, %v774
    %v785 = vunpack.c.l.b16 %v762
    %v786 = vunpack.c.l.b16 %v763
    %v787 = vunpack.c.l.b16 %v764
    %v788 = vunpack.c.l.b16 %v765
    %v789 = vunpack.c.l.b16 %v766
    %v790 = vunpack.c.l.b16 %v767
    %v791 = vunpack.c.l.b16 %v768
    %v792 = vunpack.c.l.b16 %v769
    %v793 = vpack.c.b16 %v786, %v785
    %v794 = vpack.c.b16 %v788, %v787
    %v795 = vpack.c.b16 %v790, %v789
    %v796 = vpack.c.b16 %v792, %v791
    %vm801 = vcmask 523264
    %v803 = vsel %vm801, %v761, 0
    %805 = vmatprep.subr.bf16.mxu0 0
    %806 = vmatpush1.bf16.msra.mxu0 %v793
    %807 = vmatprep.subr.bf16.mxu0 0
    %808 = vmatpush1.bf16.msra.mxu0 %v794
    %809 = vmatprep.subr.bf16.mxu0 0
    %810 = vmatpush1.bf16.msra.mxu0 %v795
    %811 = vmatprep.subr.bf16.mxu0 0
    %812 = vmatpush1.bf16.msra.mxu0 %v796
    %813 = vmatprep.subr.bf16.mxu0 0
    %814 = vmatpush1.bf16.msra.mxu0 0
    %815 = vmatprep.subr.bf16.mxu0 0
    %816 = vmatpush1.bf16.msra.mxu0 0
    %817 = vmatprep.subr.bf16.mxu0 0
    %818 = vmatpush1.bf16.msra.mxu0 0
    %819 = vmatprep.subr.bf16.mxu0 0
    %820 = vmatpush1.bf16.msra.mxu0 0
    %821 = vmatprep.subr.bf16.mxu0 0
    %822 = vmatpush1.bf16.msra.mxu0 0
    %823 = vmatprep.subr.bf16.mxu0 0
    %824 = vmatpush1.bf16.msra.mxu0 0
    %825 = vmatprep.subr.bf16.mxu0 0
    %826 = vmatpush1.bf16.msra.mxu0 0
    %827 = vmatprep.subr.bf16.mxu0 0
    %828 = vmatpush1.bf16.msra.mxu0 0
    %829 = vmatprep.subr.bf16.mxu0 0
    %830 = vmatpush1.bf16.msra.mxu0 0
    %831 = vmatprep.subr.bf16.mxu0 0
    %832 = vmatpush1.bf16.msra.mxu0 0
    %833 = vmatprep.subr.bf16.mxu0 0
    %834 = vmatpush1.bf16.msra.mxu0 0
    %835 = vmatprep.subr.bf16.mxu0 0
    %836 = vmatpush1.bf16.msra.mxu0 0
    %837 = vmatprep.mubr.bf16.mxu0 0
    %838 = vmatmul.mubr.bf16.gmra.mrb[0].mxu0 %v803
    %v839 = vpop.f32.mrb[0].mxu0
    %v840 = vadd.f32 %v775, %v839
    %v841 = vpop.f32.mrb[0].mxu0
    %v842 = vpop.f32.mrb[0].mxu0
    %v843 = vadd.f32 %v775, %v842
    %v844 = vpop.f32.mrb[0].mxu0
    %845 = vdwg.mxu0
    %v846 = vmax.f32 %v840, 0.0
    %v847 = vmax.f32 %v843, 0.0
    %v848 = vpack.c.bf16 %v847, %v846
    %v849 = vld [vmem:[%s5] sm:$0xf]
    %v850 = vld [vmem:[%s5 + $0x4] sm:$0xf]
    %v851 = vld [vmem:[%s5 + $0x8] sm:$0xf]
    %v852 = vld [vmem:[%s5 + $0xc] sm:$0xf]
    %v853 = vld [vmem:[%s6] sm:$0x1]
    %v855 = vlaneseq
    %v856 = vshrl.u32 %v855, 7
    %v857 = vsub.s32 0, %v856
    %v858 = vrot.slane %v853, %v857
    %v864 = vunpack.c.l.b16 %v849
    %v865 = vunpack.c.l.b16 %v850
    %v866 = vunpack.c.l.b16 %v851
    %v867 = vunpack.c.l.b16 %v852
    %v868 = vpack.c.b16 %v865, %v864
    %v869 = vpack.c.b16 %v867, %v866
    %vm872 = vcmask 261120
    %v874 = vsel %vm872, %v848, 0
    %876 = vmatprep.subr.bf16.mxu0 0
    %877 = vmatpush1.bf16.msra.mxu0 %v868
    %878 = vmatprep.subr.bf16.mxu0 0
    %879 = vmatpush1.bf16.msra.mxu0 %v869
    %880 = vmatprep.subr.bf16.mxu0 0
    %881 = vmatpush1.bf16.msra.mxu0 0
    %882 = vmatprep.subr.bf16.mxu0 0
    %883 = vmatpush1.bf16.msra.mxu0 0
    %884 = vmatprep.subr.bf16.mxu0 0
    %885 = vmatpush1.bf16.msra.mxu0 0
    %886 = vmatprep.subr.bf16.mxu0 0
    %887 = vmatpush1.bf16.msra.mxu0 0
    %888 = vmatprep.subr.bf16.mxu0 0
    %889 = vmatpush1.bf16.msra.mxu0 0
    %890 = vmatprep.subr.bf16.mxu0 0
    %891 = vmatpush1.bf16.msra.mxu0 0
    %892 = vmatprep.subr.bf16.mxu0 0
    %893 = vmatpush1.bf16.msra.mxu0 0
    %894 = vmatprep.subr.bf16.mxu0 0
    %895 = vmatpush1.bf16.msra.mxu0 0
    %896 = vmatprep.subr.bf16.mxu0 0
    %897 = vmatpush1.bf16.msra.mxu0 0
    %898 = vmatprep.subr.bf16.mxu0 0
    %899 = vmatpush1.bf16.msra.mxu0 0
    %900 = vmatprep.subr.bf16.mxu0 0
    %901 = vmatpush1.bf16.msra.mxu0 0
    %902 = vmatprep.subr.bf16.mxu0 0
    %903 = vmatpush1.bf16.msra.mxu0 0
    %904 = vmatprep.subr.bf16.mxu0 0
    %905 = vmatpush1.bf16.msra.mxu0 0
    %906 = vmatprep.subr.bf16.mxu0 0
    %907 = vmatpush1.bf16.msra.mxu0 0
    %908 = vmatprep.mubr.bf16.mxu0 0
    %909 = vmatmul.mubr.bf16.gmra.mrb[0].mxu0 %v874
    %v910 = vpop.f32.mrb[0].mxu0
    %v911 = vadd.f32 %v858, %v910
    %v912 = vpop.f32.mrb[0].mxu0
    %v913 = vpop.f32.mrb[0].mxu0
    %v914 = vadd.f32 %v858, %v913
    %v915 = vpop.f32.mrb[0].mxu0
    %916 = vdwg.mxu0
    %917 = vmax.xlane.f32.xlu0 %v911
    %v918 = vpop.xlane.xlu0 %917
    %919 = vmax.xlane.f32.xlu0 %v914
    %v920 = vpop.xlane.xlu0 %919
    %v921 = vsub.f32 %v911, %v918
    %v922 = vsub.f32 %v914, %v920
    %v923 = vmul.f32 %v921, 1.442695
    %v924 = vpow.pop %v923
    %v925 = vmul.f32 %v922, 1.442695
    %v926 = vpow.pop %v925
    %927 = vadd.xlane.f32.xlu0 %v924
    %v928 = vpop.xlane.xlu0 %927
    %929 = vadd.xlane.f32.xlu0 %v926
    %v930 = vpop.xlane.xlu0 %929
    %v931 = vlog2.pop %v928
    %v932 = vmul.f32 %v931, 0.6931472
    %v933 = vlog2.pop %v930
    %v934 = vmul.f32 %v933, 0.6931472
    %v935 = vsub.f32 %v921, %v932
    %v936 = vsub.f32 %v922, %v934
    %937 = vst [vmem:[#allocation2] sm:$0xff] %v935
    %938 = vst [vmem:[#allocation2 + $0x8] sm:$0xff] %v936
    // Predicated region
    $region30: #{tpu_custom_call.1} parent=1 // pred_check
      _
    $region31: #{tpu_custom_call.1} parent=1 // pred_check_branch
      %940 = sbr.rel (0) target = $region33
    $region32: #{tpu_custom_call.1} parent=1 // pred_region
      %s942 = ssub.s32 256, 256
      %943 = vsyncadd [#allocation3], %s942
      %s944 = sshll.u32 [#allocation2], 4
      %s945 = int_to_ptr.vmem [resolvable:$true] %s944
      %950 = dma.vmem_to_hbm [thread:$0]  %s945, 256, %s7, [#allocation3], 128, 128, 8
    $region33: #{tpu_custom_call.1} parent=1 // pred_fallthru
      _
    // Predicated region
    $region34: #{tpu_custom_call.1} parent=1 // pred_check
      _
    $region35: #{tpu_custom_call.1} parent=1 // pred_check_branch
      %952 = sbr.rel (0) target = $region37
    $region36: #{tpu_custom_call.1} parent=1 // pred_region
      %953 = dma.done [#allocation3], 256
    $region37: #{tpu_custom_call.1} parent=1 // pred_fallthru
      _
    %954 = vsyncpa [#allocation3], 1

</llo_original>
